<compile_context>
chip_gen: v5e
topology: v5e:2x2
jax: 0.10.0
libtpu: 0.0.40
codegen_flags: <defaults>
</compile_context>

<pallas_src>
import jax
import jax.numpy as jnp
from jax.experimental import pallas as pl
from jax.experimental.pallas import tpu as pltpu


def attention_kernel(z_ref, w1_ref, b1_ref, w2_ref, out_ref, beta_ref):
    # z_ref : (TN, M*D) lane-dense node slab
    # w1_ref: (M*D, M*H) block-diagonal first linear
    # b1_ref: (1, M*H)   bias, tiled per view
    # w2_ref: (M*H, M)   block-diagonal second linear (no bias)
    z = z_ref[...].astype(jnp.float32)                    # single load; reused below
    w1 = w1_ref[...]
    b1 = b1_ref[...]
    w2 = w2_ref[...]

    M = w2.shape[-1]
    D = z.shape[-1] // M

    # --- fused projection for all M views: two MXU matmuls ---
    h = jnp.tanh(jnp.dot(z, w1, preferred_element_type=jnp.float32) + b1)   # (TN, M*H)
    scores = jnp.dot(h, w2, preferred_element_type=jnp.float32)             # (TN, M)

    # --- numerically-stable softmax over the view axis (torch dim=1) ---
    s_max = jnp.max(scores, axis=-1, keepdims=True)                         # (TN, 1)
    e = jnp.exp(scores - s_max)                                             # (TN, M)
    denom = jnp.sum(e, axis=-1, keepdims=True)                              # (TN, 1)
    inv = pl.reciprocal(denom, approx=False)                                # exact (EUP slack)
    beta = e * inv                                                          # (TN, M)

    # --- weighted sum over views: (beta * z).sum(1), lane slices of z ---
    out = beta[:, 0:1] * z[:, 0:D]
    for m in range(1, M):
        out = out + beta[:, m:m + 1] * z[:, m * D:(m + 1) * D]              # (TN, D)

    out_ref[...] = out.astype(out_ref.dtype)                                # (TN, D)
    beta_ref[...] = beta.astype(beta_ref.dtype)                             # (TN, M), lane-dense


def _choose_tn(n, target=4096):
    """Pick an 8-aligned N-tile.  Large enough (~4K rows) to amortize per-step
    pipeline overhead; when the problem is small, still split into >=2 grid
    steps so both v7x TensorCores get work."""
    n8 = max(8, pl.cdiv(n, 8) * 8)
    if n8 <= 8:
        return 8
    if n8 <= 2 * target:
        half = pl.cdiv(n8, 2)
        return max(8, pl.cdiv(half, 8) * 8)
    return target


def attention_forward(z, w1, b1, w2, *, tn=None):
    N, M, D = z.shape
    H = w1.shape[-1]

    # Lane-dense z slab: (N, M*D).  Free reshape (contiguous per node).
    z_flat = z.reshape(N, M * D)

    if tn is None:
        tn = _choose_tn(N)
    n_pad = pl.cdiv(N, tn) * tn
    if n_pad != N:
        z_flat = jnp.pad(z_flat, ((0, n_pad - N), (0, 0)))

    # Block-diagonal fused weights (constants, built once in the wrapper).
    eye_m = jnp.eye(M, dtype=jnp.float32)
    w1_big = jnp.kron(eye_m, w1.astype(jnp.float32))                 # (M*D, M*H)
    b1_tile = jnp.tile(b1.astype(jnp.float32).reshape(1, H), (1, M)) # (1, M*H)
    w2_big = jnp.kron(eye_m, w2.astype(jnp.float32).reshape(H, 1))   # (M*H, M)

    itemsize = z.dtype.itemsize
    cost = pl.CostEstimate(
        flops=2 * n_pad * ((M * D) * (M * H) + (M * H) * M + M * D),
        transcendentals=n_pad * (M * H + M + 1),                     # tanh + exp + recip
        bytes_accessed=(n_pad * M * D + n_pad * D + n_pad * M) * itemsize
        + (w1_big.size + b1_tile.size + w2_big.size) * 4,
    )

    grid_spec = pltpu.PrefetchScalarGridSpec(
        num_scalar_prefetch=0,
        grid=(n_pad // tn,),
        in_specs=[
            pl.BlockSpec((tn, M * D), lambda i: (i, 0)),     # z slab (streamed)
            pl.BlockSpec((M * D, M * H), lambda i: (0, 0)),  # W1_big (resident)
            pl.BlockSpec((1, M * H), lambda i: (0, 0)),      # b1 row
            pl.BlockSpec((M * H, M), lambda i: (0, 0)),      # W2_big
        ],
        out_specs=[
            pl.BlockSpec((tn, D), lambda i: (i, 0)),         # (beta*z).sum(1)
            pl.BlockSpec((tn, M), lambda i: (i, 0)),         # beta (lane-dense 2-D)
        ],
    )

    out, beta2d = pl.pallas_call(
        attention_kernel,
        out_shape=(
            jax.ShapeDtypeStruct((n_pad, D), z.dtype),
            jax.ShapeDtypeStruct((n_pad, M), z.dtype),
        ),
        grid_spec=grid_spec,
        compiler_params=pltpu.CompilerParams(
            dimension_semantics=("parallel",),
            vmem_limit_bytes=32 * 1024 * 1024,
        ),
        cost_estimate=cost,
    )(z_flat, w1_big, b1_tile, w2_big)

    if n_pad != N:
        out = out[:N]
        beta2d = beta2d[:N]

    # Torch returns beta with a trailing singleton dim; this reshape is free in XLA.
    return out, beta2d.reshape(N, M, 1)


def attention_reference(z, w1, b1, w2):
    # Plain-JAX reference matching the torch module.
    h = jnp.tanh(jnp.einsum("nmd,dh->nmh", z, w1) + b1)     # Linear + Tanh
    w = jnp.einsum("nmh,ho->nmo", h, w2)                    # Linear(H->1), no bias
    beta = jax.nn.softmax(w, axis=1)                        # softmax over dim=1
    return (beta * z).sum(axis=1), beta


if __name__ == "__main__":
    # Small shapes consistent with the module: N nodes, M=4 views, in_size=32, hidden=16
    N, M, D, H = 16, 4, 32, 16

    key = jax.random.PRNGKey(0)
    kz, kw1, kb1, kw2 = jax.random.split(key, 4)

    z = jax.random.normal(kz, (N, M, D), dtype=jnp.float32)

    # Params with nn.Linear(in_size, hidden) / nn.Linear(hidden, 1, bias=False) shapes.
    w1 = jax.random.normal(kw1, (D, H), dtype=jnp.float32) * 0.1
    b1 = jax.random.normal(kb1, (H,), dtype=jnp.float32) * 0.1
    w2 = jax.random.normal(kw2, (H, 1), dtype=jnp.float32) * 0.1

    out, beta = attention_forward(z, w1, b1, w2)
    out = jax.block_until_ready(out)
    beta = jax.block_until_ready(beta)

    # Check against plain-JAX reference (exact reciprocal now -> tight agreement;
    # tolerance leaves headroom only for MXU f32 matmul pass differences).
    ref_out, ref_beta = attention_reference(z, w1, b1, w2)
    assert jnp.allclose(out, ref_out, atol=2e-3, rtol=2e-3)
    assert jnp.allclose(beta, ref_beta, atol=2e-3, rtol=2e-3)
    assert out.shape == (N, D) and beta.shape == (N, M, 1)

    print("KERNEL_OK")
</pallas_src>

<mosaic_0001>
module attributes {stable_mosaic.version = 11 : i64} {
  func.func @attention_kernel(%arg0: i32, %arg1: memref<8x128xf32, #tpu.memory_space<vmem>>, %arg2: memref<128x64xf32, #tpu.memory_space<vmem>>, %arg3: memref<1x64xf32, #tpu.memory_space<vmem>>, %arg4: memref<64x4xf32, #tpu.memory_space<vmem>>, %arg5: memref<8x32xf32, #tpu.memory_space<vmem>>, %arg6: memref<8x4xf32, #tpu.memory_space<vmem>>) attributes {dimension_semantics = [#tpu.dimension_semantics<parallel>], iteration_bounds = array<i64: 2>, scalar_prefetch = 0 : i64, scratch_operands = 0 : i64, tpu.core_type = #tpu.core_type<tc>, window_params = [{transform_indices = @transform_0, window_bounds = array<i64: 8, 128>}, {pipeline_mode = #tpu.pipeline_mode<synchronous>, transform_indices = @transform_1, window_bounds = array<i64: 128, 64>}, {pipeline_mode = #tpu.pipeline_mode<synchronous>, transform_indices = @transform_2, window_bounds = array<i64: 1, 64>}, {pipeline_mode = #tpu.pipeline_mode<synchronous>, transform_indices = @transform_3, window_bounds = array<i64: 64, 4>}, {transform_indices = @transform_4, window_bounds = array<i64: 8, 32>}, {transform_indices = @transform_5, window_bounds = array<i64: 8, 4>}]} {
    %c0 = arith.constant 0 : index
    %c0_0 = arith.constant 0 : index
    %0 = vector.load %arg1[%c0, %c0_0] : memref<8x128xf32, #tpu.memory_space<vmem>>, vector<8x128xf32>
    %c0_1 = arith.constant 0 : index
    %c0_2 = arith.constant 0 : index
    %1 = vector.load %arg2[%c0_1, %c0_2] : memref<128x64xf32, #tpu.memory_space<vmem>>, vector<128x64xf32>
    %c0_3 = arith.constant 0 : index
    %c0_4 = arith.constant 0 : index
    %2 = vector.load %arg3[%c0_3, %c0_4] : memref<1x64xf32, #tpu.memory_space<vmem>>, vector<1x64xf32>
    %c0_5 = arith.constant 0 : index
    %c0_6 = arith.constant 0 : index
    %3 = vector.load %arg4[%c0_5, %c0_6] : memref<64x4xf32, #tpu.memory_space<vmem>>, vector<64x4xf32>
    %cst = arith.constant dense<0.000000e+00> : vector<8x64xf32>
    %4 = tpu.matmul %0, %1, %cst {dimension_numbers = #tpu.dot_dimension_numbers<[1], [0], [0], [1], [0, 0, 1, 1], [], []>} : vector<8x128xf32>, vector<128x64xf32>, vector<8x64xf32> -> vector<8x64xf32>
    %5 = vector.broadcast %2 : vector<1x64xf32> to vector<8x64xf32>
    %6 = arith.addf %4, %5 : vector<8x64xf32>
    %7 = math.tanh %6 : vector<8x64xf32>
    %cst_7 = arith.constant dense<0.000000e+00> : vector<8x4xf32>
    %8 = tpu.matmul %7, %3, %cst_7 {dimension_numbers = #tpu.dot_dimension_numbers<[1], [0], [0], [1], [0, 0, 1, 1], [], []>} : vector<8x64xf32>, vector<64x4xf32>, vector<8x4xf32> -> vector<8x4xf32>
    %cst_8 = arith.constant dense<0xFF800000> : vector<8xf32>
    %9 = vector.multi_reduction <maximumf>, %8, %cst_8 [1] : vector<8x4xf32> to vector<8xf32>
    %10 = vector.shape_cast %9 : vector<8xf32> to vector<8x1xf32>
    %11 = vector.broadcast %10 : vector<8x1xf32> to vector<8x4xf32>
    %12 = arith.subf %8, %11 : vector<8x4xf32>
    %13 = math.exp %12 : vector<8x4xf32>
    %cst_9 = arith.constant dense<0.000000e+00> : vector<8xf32>
    %14 = vector.multi_reduction <add>, %13, %cst_9 [1] : vector<8x4xf32> to vector<8xf32>
    %15 = vector.shape_cast %14 : vector<8xf32> to vector<8x1xf32>
    %16 = tpu.reciprocal %15 : vector<8x1xf32> -> vector<8x1xf32>
    %17 = vector.broadcast %16 : vector<8x1xf32> to vector<8x4xf32>
    %18 = arith.mulf %13, %17 : vector<8x4xf32>
    %19 = vector.extract_strided_slice %18 {offsets = [0, 0], sizes = [8, 1], strides = [1, 1]} : vector<8x4xf32> to vector<8x1xf32>
    %20 = vector.extract_strided_slice %0 {offsets = [0, 0], sizes = [8, 32], strides = [1, 1]} : vector<8x128xf32> to vector<8x32xf32>
    %21 = vector.broadcast %19 : vector<8x1xf32> to vector<8x32xf32>
    %22 = arith.mulf %21, %20 : vector<8x32xf32>
    %23 = vector.extract_strided_slice %18 {offsets = [0, 1], sizes = [8, 1], strides = [1, 1]} : vector<8x4xf32> to vector<8x1xf32>
    %24 = vector.extract_strided_slice %0 {offsets = [0, 32], sizes = [8, 32], strides = [1, 1]} : vector<8x128xf32> to vector<8x32xf32>
    %25 = vector.broadcast %23 : vector<8x1xf32> to vector<8x32xf32>
    %26 = arith.mulf %25, %24 : vector<8x32xf32>
    %27 = arith.addf %22, %26 : vector<8x32xf32>
    %28 = vector.extract_strided_slice %18 {offsets = [0, 2], sizes = [8, 1], strides = [1, 1]} : vector<8x4xf32> to vector<8x1xf32>
    %29 = vector.extract_strided_slice %0 {offsets = [0, 64], sizes = [8, 32], strides = [1, 1]} : vector<8x128xf32> to vector<8x32xf32>
    %30 = vector.broadcast %28 : vector<8x1xf32> to vector<8x32xf32>
    %31 = arith.mulf %30, %29 : vector<8x32xf32>
    %32 = arith.addf %27, %31 : vector<8x32xf32>
    %33 = vector.extract_strided_slice %18 {offsets = [0, 3], sizes = [8, 1], strides = [1, 1]} : vector<8x4xf32> to vector<8x1xf32>
    %34 = vector.extract_strided_slice %0 {offsets = [0, 96], sizes = [8, 32], strides = [1, 1]} : vector<8x128xf32> to vector<8x32xf32>
    %35 = vector.broadcast %33 : vector<8x1xf32> to vector<8x32xf32>
    %36 = arith.mulf %35, %34 : vector<8x32xf32>
    %37 = arith.addf %32, %36 : vector<8x32xf32>
    %c0_10 = arith.constant 0 : index
    %c0_11 = arith.constant 0 : index
    %38 = vector.load %arg5[%c0_10, %c0_11] : memref<8x32xf32, #tpu.memory_space<vmem>>, vector<8x32xf32>
    tpu.vector_store %arg5[%c0_10, %c0_11], %37 {strides = array<i32>} : memref<8x32xf32, #tpu.memory_space<vmem>>, vector<8x32xf32>,
    %c0_12 = arith.constant 0 : index
    %c0_13 = arith.constant 0 : index
    %39 = vector.load %arg6[%c0_12, %c0_13] : memref<8x4xf32, #tpu.memory_space<vmem>>, vector<8x4xf32>
    tpu.vector_store %arg6[%c0_12, %c0_13], %18 {strides = array<i32>} : memref<8x4xf32, #tpu.memory_space<vmem>>, vector<8x4xf32>,
    return
  }
  func.func @transform_0(%arg0: i32) -> (i32, i32) {
    %c0_i32 = arith.constant 0 : i32
    %c0_i32_0 = arith.constant 0 : i32
    return %arg0, %c0_i32 : i32, i32
  }
  func.func @transform_1(%arg0: i32) -> (i32, i32) {
    %c0_i32 = arith.constant 0 : i32
    %c0_i32_0 = arith.constant 0 : i32
    %c0_i32_1 = arith.constant 0 : i32
    return %c0_i32, %c0_i32_0 : i32, i32
  }
  func.func @transform_2(%arg0: i32) -> (i32, i32) {
    %c0_i32 = arith.constant 0 : i32
    %c0_i32_0 = arith.constant 0 : i32
    %c0_i32_1 = arith.constant 0 : i32
    return %c0_i32, %c0_i32_0 : i32, i32
  }
  func.func @transform_3(%arg0: i32) -> (i32, i32) {
    %c0_i32 = arith.constant 0 : i32
    %c0_i32_0 = arith.constant 0 : i32
    %c0_i32_1 = arith.constant 0 : i32
    return %c0_i32, %c0_i32_0 : i32, i32
  }
  func.func @transform_4(%arg0: i32) -> (i32, i32) {
    %c0_i32 = arith.constant 0 : i32
    %c0_i32_0 = arith.constant 0 : i32
    return %arg0, %c0_i32 : i32, i32
  }
  func.func @transform_5(%arg0: i32) -> (i32, i32) {
    %c0_i32 = arith.constant 0 : i32
    %c0_i32_0 = arith.constant 0 : i32
    return %arg0, %c0_i32 : i32, i32
  }
}

</mosaic_0001>

<llo_original>
// kernel: tpu_custom_call.1
$region0: #{tpu_custom_call.1}
  #allocation0 [shape = 'u32[]', space=smem, size = 0x4, offset = 0x4, fixed_abs, tag = 'smem constant byte address 0x4 - core index']
  #allocation1 [shape = 'u32[72,128]{1,0:T(1,128)}', space=vmem, size = 0x9000, scoped, tag = 'internal scratch']
  %s0 = inlined_call_operand.vmem [shape: f32[16,128], index: 0, kind: input, shape index: {}]
  %s1 = inlined_call_operand.vmem [shape: f32[128,64], index: 1, kind: input, shape index: {}]
  %s2 = inlined_call_operand.vmem [shape: f32[1,64], index: 2, kind: input, shape index: {}]
  %s3 = inlined_call_operand.vmem [shape: f32[64,4], index: 3, kind: input, shape index: {}]
  %s4 = inlined_call_operand.hbm [shape: f32[16,32], index: 4, kind: output, shape index: {0}]
  %s5 = inlined_call_operand.vmem [shape: f32[16,4], index: 5, kind: output, shape index: {1}]
  %6 = xla_tuple %s4, %s5
  %s7 = sld [smem:[#allocation0]]
  $region57: #{tpu_custom_call.1} parent=0
    _
  %s9 = ssub.s32 1, %s7
  %s10 = scalar_select 0, %s9, %s7
  $region1: #{tpu_custom_call.1} parent=0
    #allocation2 [shape = 'u8[8192]{0}', space=vmem, size = 0x2000, scoped, tag = 'output window, operand 0']
    #allocation3 [shape = 's32[2]{0}', space=sflag, size = 0x8, scoped, tag = 'scoped memory for tpu_custom_call.1']
    %11 = vsyncpa [#allocation3], 0
    %s12 = scalar_lea.sflag [#allocation3], 1
    %13 = vsyncpa %s12, 0
    loop: start=0, step=1, limit=4
    $region2: #{tpu_custom_call.1} parent=1 // loop_pre_header
      _
    $region3: #{tpu_custom_call.1} parent=1 // loop_header
      %s15 = sphi 0, %s19
      %p16 = scmp.ge.s32.totalorder %s15, 4
      %s25 = sphi 0, %s27
      %s28 = sphi 0, %s25
      %s29 = sphi 0, %s28
      %s45 = sphi 0, %s29
      %s49 = sphi 0, %s49
      %s51 = sphi 0, %s49
      %s52 = sphi 0, %s51
      %s66 = sphi 0, %s52
      %s70 = sphi 0, %s70
      %s72 = sphi 0, %s70
      %s73 = sphi 0, %s72
      %s87 = sphi 0, %s73
      %s91 = sphi 0, %s91
      %s93 = sphi 0, %s91
      %s94 = sphi 0, %s93
      %s108 = sphi 0, %s94
      %s114 = sphi 0, %s116
      %s117 = sphi 0, %s114
      %s118 = sphi 0, %s117
      %s134 = sphi 0, %s118
      %s140 = sphi 0, %s142
      %s143 = sphi 0, %s140
      %s144 = sphi 0, %s143
      %s160 = sphi 0, %s144
    $region4: #{tpu_custom_call.1} parent=1 // loop_header_branch
      %18 = sbr.rel (%p16) target = $region8
    $region5: #{tpu_custom_call.1} parent=1 // loop_body
      %s20 = ssub.s32 %s15, 1
      %s21 = ssub.s32 %s15, 2
      %s22 = sadd.s32 %s15, 1
      %s23 = ssub.s32 %s15, %s22
      %p24 = scmp.eq.s32.totalorder %s23, 0
      %s26 = sadd.s32 %s25, 1
      %s27 = scalar_select %p24, %s25, %s26
      %p30 = pneg %p24
      %p31 = scmp.eq.s32.totalorder %s15, 1
      %p32 = por %p30, %p31
      %p33 = scmp.ne.s32.totalorder %s25, %s28
      %p34 = scmp.eq.s32.totalorder %s15, 0
      %p35 = por %p33, %p34
      %p36 = scmp.ne.s32.totalorder %s25, %s28
      %p37 = scmp.eq.s32.totalorder %s20, 1
      %p38 = por %p36, %p37
      %p39 = scmp.ne.s32.totalorder %s28, %s29
      %p40 = scmp.eq.s32.totalorder %s20, 0
      %p41 = por %p39, %p40
      %p42 = scmp.ne.s32.totalorder %s28, %s29
      %p43 = scmp.eq.s32.totalorder %s21, 1
      %p44 = por %p42, %p43
      %p46 = scmp.ne.s32.totalorder %s29, %s45
      %p47 = scmp.eq.s32.totalorder %s21, 0
      %p48 = por %p46, %p47
      %s50 = sadd.s32 %s49, 1
      %p53 = scmp.eq.s32.totalorder %s15, 1
      %p54 = scmp.ne.s32.totalorder %s49, %s51
      %p55 = scmp.eq.s32.totalorder %s15, 0
      %p56 = por %p54, %p55
      %p57 = scmp.ne.s32.totalorder %s49, %s51
      %p58 = scmp.eq.s32.totalorder %s20, 1
      %p59 = por %p57, %p58
      %p60 = scmp.ne.s32.totalorder %s51, %s52
      %p61 = scmp.eq.s32.totalorder %s20, 0
      %p62 = por %p60, %p61
      %p63 = scmp.ne.s32.totalorder %s51, %s52
      %p64 = scmp.eq.s32.totalorder %s21, 1
      %p65 = por %p63, %p64
      %p67 = scmp.ne.s32.totalorder %s52, %s66
      %p68 = scmp.eq.s32.totalorder %s21, 0
      %p69 = por %p67, %p68
      %s71 = sadd.s32 %s70, 1
      %p74 = scmp.eq.s32.totalorder %s15, 1
      %p75 = scmp.ne.s32.totalorder %s70, %s72
      %p76 = scmp.eq.s32.totalorder %s15, 0
      %p77 = por %p75, %p76
      %p78 = scmp.ne.s32.totalorder %s70, %s72
      %p79 = scmp.eq.s32.totalorder %s20, 1
      %p80 = por %p78, %p79
      %p81 = scmp.ne.s32.totalorder %s72, %s73
      %p82 = scmp.eq.s32.totalorder %s20, 0
      %p83 = por %p81, %p82
      %p84 = scmp.ne.s32.totalorder %s72, %s73
      %p85 = scmp.eq.s32.totalorder %s21, 1
      %p86 = por %p84, %p85
      %p88 = scmp.ne.s32.totalorder %s73, %s87
      %p89 = scmp.eq.s32.totalorder %s21, 0
      %p90 = por %p88, %p89
      %s92 = sadd.s32 %s91, 1
      %p95 = scmp.eq.s32.totalorder %s15, 1
      %p96 = scmp.ne.s32.totalorder %s91, %s93
      %p97 = scmp.eq.s32.totalorder %s15, 0
      %p98 = por %p96, %p97
      %p99 = scmp.ne.s32.totalorder %s91, %s93
      %p100 = scmp.eq.s32.totalorder %s20, 1
      %p101 = por %p99, %p100
      %p102 = scmp.ne.s32.totalorder %s93, %s94
      %p103 = scmp.eq.s32.totalorder %s20, 0
      %p104 = por %p102, %p103
      %p105 = scmp.ne.s32.totalorder %s93, %s94
      %p106 = scmp.eq.s32.totalorder %s21, 1
      %p107 = por %p105, %p106
      %p109 = scmp.ne.s32.totalorder %s94, %s108
      %p110 = scmp.eq.s32.totalorder %s21, 0
      %p111 = por %p109, %p110
      %s112 = ssub.s32 %s15, %s22
      %p113 = scmp.eq.s32.totalorder %s112, 0
      %s115 = sadd.s32 %s114, 1
      %s116 = scalar_select %p113, %s114, %s115
      %p119 = pneg %p113
      %p120 = scmp.eq.s32.totalorder %s15, 1
      %p121 = por %p119, %p120
      %p122 = scmp.ne.s32.totalorder %s114, %s117
      %p123 = scmp.eq.s32.totalorder %s15, 0
      %p124 = por %p122, %p123
      %p125 = scmp.ne.s32.totalorder %s114, %s117
      %p126 = scmp.eq.s32.totalorder %s20, 1
      %p127 = por %p125, %p126
      %p128 = scmp.ne.s32.totalorder %s117, %s118
      %p129 = scmp.eq.s32.totalorder %s20, 0
      %p130 = por %p128, %p129
      %p131 = scmp.ne.s32.totalorder %s117, %s118
      %p132 = scmp.eq.s32.totalorder %s21, 1
      %p133 = por %p131, %p132
      %p135 = scmp.ne.s32.totalorder %s118, %s134
      %p136 = scmp.eq.s32.totalorder %s21, 0
      %p137 = por %p135, %p136
      %s138 = ssub.s32 %s15, %s22
      %p139 = scmp.eq.s32.totalorder %s138, 0
      %s141 = sadd.s32 %s140, 1
      %s142 = scalar_select %p139, %s140, %s141
      %p145 = pneg %p139
      %p146 = scmp.eq.s32.totalorder %s15, 1
      %p147 = por %p145, %p146
      %p148 = scmp.ne.s32.totalorder %s140, %s143
      %p149 = scmp.eq.s32.totalorder %s15, 0
      %p150 = por %p148, %p149
      %p151 = scmp.ne.s32.totalorder %s140, %s143
      %p152 = scmp.eq.s32.totalorder %s20, 1
      %p153 = por %p151, %p152
      %p154 = scmp.ne.s32.totalorder %s143, %s144
      %p155 = scmp.eq.s32.totalorder %s20, 0
      %p156 = por %p154, %p155
      %p157 = scmp.ne.s32.totalorder %s143, %s144
      %p158 = scmp.eq.s32.totalorder %s21, 1
      %p159 = por %p157, %p158
      %p161 = scmp.ne.s32.totalorder %s144, %s160
      %p162 = scmp.eq.s32.totalorder %s21, 0
      %p163 = por %p161, %p162
      %p164 = scmp.le.s32.totalorder 1, %s15
      %p165 = scmp.lt.s32.totalorder %s15, 3
      %p166 = pnand %p164, %p165
      %p167 = pneg %p166
      // Predicated region
      $region9: #{tpu_custom_call.1} parent=5 // pred_check
        _
      $region10: #{tpu_custom_call.1} parent=5 // pred_check_branch
        %169 = sbr.rel (%p166) target = $region12
      $region11: #{tpu_custom_call.1} parent=5 // pred_region
        %s170 = ssub.s32 %s15, 1
        // Predicated region
        $region13: #{tpu_custom_call.1} parent=11 // pred_check
          %p171 = pneg %p62
        $region14: #{tpu_custom_call.1} parent=11 // pred_check_branch
          %173 = sbr.rel (%p171) target = $region16
        $region15: #{tpu_custom_call.1} parent=11 // pred_region
          _
        $region16: #{tpu_custom_call.1} parent=11 // pred_fallthru
          _
        // Predicated region
        $region17: #{tpu_custom_call.1} parent=11 // pred_check
          %p174 = pneg %p83
        $region18: #{tpu_custom_call.1} parent=11 // pred_check_branch
          %176 = sbr.rel (%p174) target = $region20
        $region19: #{tpu_custom_call.1} parent=11 // pred_region
          _
        $region20: #{tpu_custom_call.1} parent=11 // pred_fallthru
          _
        // Predicated region
        $region21: #{tpu_custom_call.1} parent=11 // pred_check
          %p177 = pneg %p104
        $region22: #{tpu_custom_call.1} parent=11 // pred_check_branch
          %179 = sbr.rel (%p177) target = $region24
        $region23: #{tpu_custom_call.1} parent=11 // pred_region
          _
        $region24: #{tpu_custom_call.1} parent=11 // pred_fallthru
          _
      $region12: #{tpu_custom_call.1} parent=5 // pred_fallthru
        _
      %p180 = scmp.lt.s32.totalorder %s15, 2
      // Predicated region
      $region25: #{tpu_custom_call.1} parent=5 // pred_check
        %p181 = pneg %p180
      $region26: #{tpu_custom_call.1} parent=5 // pred_check_branch
        %183 = sbr.rel (%p181) target = $region28
      $region27: #{tpu_custom_call.1} parent=5 // pred_region
        // Predicated region
        $region29: #{tpu_custom_call.1} parent=27 // pred_check
          %p184 = pneg %p35
        $region30: #{tpu_custom_call.1} parent=27 // pred_check_branch
          %186 = sbr.rel (%p184) target = $region32
        $region31: #{tpu_custom_call.1} parent=27 // pred_region
          %p187 = scmp.lt.s32.totalorder %s15, 1
          %s188 = scalar_select %p187, %s15, 1
          %s189 = smul.addr %s188, 8
          %s190 = scalar_lea.vmem %s0, %s189
        $region32: #{tpu_custom_call.1} parent=27 // pred_fallthru
          _
      $region28: #{tpu_custom_call.1} parent=5 // pred_fallthru
        _
      %p191 = scmp.le.s32.totalorder 1, %s15
      %p192 = scmp.lt.s32.totalorder %s15, 3
      %p193 = pnand %p191, %p192
      %p194 = pneg %p193
      // Predicated region
      $region33: #{tpu_custom_call.1} parent=5 // pred_check
        _
      $region34: #{tpu_custom_call.1} parent=5 // pred_check_branch
        %196 = sbr.rel (%p193) target = $region36
      $region35: #{tpu_custom_call.1} parent=5 // pred_region
        %s197 = ssub.s32 %s15, 1
        %p198 = scmp.lt.s32.totalorder %s20, 1
        %s199 = scalar_select %p198, %s20, 1
        %s200 = smul.addr %s199, 8
        %s201 = scalar_lea.vmem %s0, %s200
        %p202 = pneg %p41
        %p203 = pneg %p38
        %p204 = pneg %p62
        %p205 = pneg %p59
        %p206 = pneg %p83
        %p207 = pneg %p80
        %p208 = pneg %p104
        %p209 = pneg %p101
        %p210 = pneg %p130
        %p211 = pneg %p127
        %s212 = sand.u32 %s117, 1
        %s213 = scalar_lea.sflag [#allocation3], %s212
        %s214 = sand.u32 %s117, 1
        %s215 = smul.addr %s214, 8
        %s216 = scalar_lea.vmem [#allocation2], %s215
        %p217 = pneg %p156
        %p218 = pneg %p153
        %p219 = scmp.lt.s32.totalorder %s20, 1
        %s220 = scalar_select %p219, %s20, 1
        %s221 = smul.addr %s220, 8
        %s222 = scalar_lea.vmem %s5, %s221
        %p223 = scmp.lt.s32.totalorder %s20, 1
        %s224 = scalar_select %p223, %s20, 1
        %s225 = smul.addr %s224, 8
        %s226 = scalar_lea.vmem %s0, %s225
        %p227 = scmp.lt.s32.totalorder %s20, 1
        %s228 = scalar_select %p227, %s20, 1
        %s229 = smul.addr %s228, 8
        %s230 = scalar_lea.vmem %s5, %s229
        %v231 = vld [vmem:[%s226] sm:$0xff]
        %v232 = vld [vmem:[%s1] sm:$0xff]
        %v233 = vld [vmem:[%s1 + $0x8] sm:$0xff]
        %v234 = vld [vmem:[%s1 + $0x10] sm:$0xff]
        %v235 = vld [vmem:[%s1 + $0x18] sm:$0xff]
        %v236 = vld [vmem:[%s1 + $0x20] sm:$0xff]
        %v237 = vld [vmem:[%s1 + $0x28] sm:$0xff]
        %v238 = vld [vmem:[%s1 + $0x30] sm:$0xff]
        %v239 = vld [vmem:[%s1 + $0x38] sm:$0xff]
        %v240 = vld [vmem:[%s1 + $0x40] sm:$0xff]
        %v241 = vld [vmem:[%s1 + $0x48] sm:$0xff]
        %v242 = vld [vmem:[%s1 + $0x50] sm:$0xff]
        %v243 = vld [vmem:[%s1 + $0x58] sm:$0xff]
        %v244 = vld [vmem:[%s1 + $0x60] sm:$0xff]
        %v245 = vld [vmem:[%s1 + $0x68] sm:$0xff]
        %v246 = vld [vmem:[%s1 + $0x70] sm:$0xff]
        %v247 = vld [vmem:[%s1 + $0x78] sm:$0xff]
        %v248 = vld [vmem:[%s2] sm:$0x1]
        %v249 = vld [vmem:[%s3] sm:$0xff]
        %v250 = vld [vmem:[%s3 + $0x8] sm:$0xff]
        %v251 = vld [vmem:[%s3 + $0x10] sm:$0xff]
        %v252 = vld [vmem:[%s3 + $0x18] sm:$0xff]
        %v253 = vld [vmem:[%s3 + $0x20] sm:$0xff]
        %v254 = vld [vmem:[%s3 + $0x28] sm:$0xff]
        %v255 = vld [vmem:[%s3 + $0x30] sm:$0xff]
        %v256 = vld [vmem:[%s3 + $0x38] sm:$0xff]
        %v258 = vperm.slane %v248, 0
        %260 = vmatpush.msra.mxu0 %v247
        %261 = vmatpush.msra.mxu0 %v246
        %262 = vmatpush.msra.mxu0 %v245
        %263 = vmatpush.msra.mxu0 %v244
        %264 = vmatpush.msra.mxu0 %v243
        %265 = vmatpush.msra.mxu0 %v242
        %266 = vmatpush.msra.mxu0 %v241
        %267 = vmatpush.msra.mxu0 %v240
        %268 = vmatpush.msra.mxu0 %v239
        %269 = vmatpush.msra.mxu0 %v238
        %270 = vmatpush.msra.mxu0 %v237
        %271 = vmatpush.msra.mxu0 %v236
        %272 = vmatpush.msra.mxu0 %v235
        %273 = vmatpush.msra.mxu0 %v234
        %274 = vmatpush.msra.mxu0 %v233
        %275 = vmatpush.msra.mxu0 %v232
        %276 = vmatmul.f32.gmra.mxu0 %v231
        %v277 = vpop.f32.mrf.mxu0
        %v278 = vadd.f32 %v258, %v277
        %279 = vdwg.mxu0
        %v280 = vtanh.pop %v278
        %vm281 = vcmask 523264
        %v283 = vsel %vm281, %v280, 0
        %285 = vmatpush.msra.mxu0 0.0
        %286 = vmatpush.msra.mxu0 0.0
        %287 = vmatpush.msra.mxu0 0.0
        %288 = vmatpush.msra.mxu0 0.0
        %289 = vmatpush.msra.mxu0 0.0
        %290 = vmatpush.msra.mxu0 0.0
        %291 = vmatpush.msra.mxu0 0.0
        %292 = vmatpush.msra.mxu0 0.0
        %293 = vmatpush.msra.mxu0 %v256
        %294 = vmatpush.msra.mxu0 %v255
        %295 = vmatpush.msra.mxu0 %v254
        %296 = vmatpush.msra.mxu0 %v253
        %297 = vmatpush.msra.mxu0 %v252
        %298 = vmatpush.msra.mxu0 %v251
        %299 = vmatpush.msra.mxu0 %v250
        %300 = vmatpush.msra.mxu0 %v249
        %301 = vmatmul.f32.gmra.mxu0 %v283
        %v302 = vpop.f32.mrf.mxu0
        %v303 = vadd.f32 0.0, %v302
        %304 = vdwg.mxu0
        %vm305 = vcmask 31744
        %v306 = vsel %vm305, %v303, -inf
        %307 = vmax.xlane.f32.xlu0 %v306
        %v308 = vpop.xlane.xlu0 %307
        %v309 = vsub.f32 %v303, %v308
        %v310 = vmul.f32 %v309, 1.442695
        %v311 = vpow.pop %v310
        %v312 = vsel %vm305, %v311, 0.0
        %313 = vadd.xlane.f32.xlu0 %v312
        %v314 = vpop.xlane.xlu0 %313
        %v315 = vrcp.pop %v314
        %v316 = vmul.f32 %v314, %v315
        %v317 = vsub.f32 1.0, %v316
        %v318 = vmul.f32 %v315, %v317
        %v319 = vadd.f32 %v315, %v318
        %vm320 = vweird.f32 %v314
        %vm321 = vweird.f32 %v315
        %vm322 = vmor %vm320, %vm321
        %v323 = vsel %vm322, %v315, %v319
        %v324 = vand.u32 2147483647, %v314
        %vm325 = vcmp.eq.f32.partialorder %v324, 8.507059e+37
        %v326 = vand.u32 %v314, 2147483648
        %v327 = vor.u32 1.1754944e-38, %v326
        %v328 = vsel %vm325, %v327, %v323
        %v329 = vmul.f32 %v311, %v328
        %331 = vset.pattern.permute.xlu0 0
        %332 = vperm.xlu0 %331, %v329
        %v333 = vpop.permute.xlu0 %332
        %v335 = vmul.f32 %v333, %v231
        %336 = vset.pattern.permute.xlu0 1
        %337 = vperm.xlu0 %336, %v329
        %v338 = vpop.permute.xlu0 %337
        %v340 = vmul.f32 %v338, %v231
        %342 = vrot.lane.b32.xlu0 %v340, 96
        %v343 = vpop.permute.xlu0 %342
        %v345 = vadd.f32 %v335, %v343
        %346 = vset.pattern.permute.xlu0 2
        %347 = vperm.xlu0 %346, %v329
        %v348 = vpop.permute.xlu0 %347
        %v350 = vmul.f32 %v348, %v231
        %352 = vrot.lane.b32.xlu0 %v350, 64
        %v353 = vpop.permute.xlu0 %352
        %v355 = vadd.f32 %v345, %v353
        %356 = vset.pattern.permute.xlu0 3
        %357 = vperm.xlu0 %356, %v329
        %v358 = vpop.permute.xlu0 %357
        %v360 = vmul.f32 %v358, %v231
        %362 = vrot.lane.b32.xlu0 %v360, 32
        %v363 = vpop.permute.xlu0 %362
        %v365 = vadd.f32 %v355, %v363
        %vm366 = vcmask 261120
        %367 = vst.msk [vmem:[%s216] sm:$0xff] %vm366, %v365
        %368 = vst.msk [vmem:[%s230] sm:$0xff] %vm305, %v329
        %s369 = sand.u32 %s117, 1
        %s370 = scalar_lea.sflag [#allocation3], %s369
        %s371 = sand.u32 %s117, 1
        %s372 = smul.addr %s371, 8
        %s373 = scalar_lea.vmem [#allocation2], %s372
        %p374 = scmp.lt.s32.totalorder %s20, 1
        %s375 = scalar_select %p374, %s20, 1
        %s376 = smul.addr %s375, 8
        %s377 = scalar_lea.vmem %s5, %s376
        // Predicated region
        $region37: #{tpu_custom_call.1} parent=35 // pred_check
          %p378 = pneg %p127
        $region38: #{tpu_custom_call.1} parent=35 // pred_check_branch
          %380 = sbr.rel (%p378) target = $region40
        $region39: #{tpu_custom_call.1} parent=35 // pred_region
          %382 = vsyncadd %s370, 0
          %s383 = smul.addr %s20, 8
          %s384 = scalar_lea.hbm %s4, %s383
          %s386 = sshll.u32 %s373, 4
          %s387 = int_to_ptr.vmem [resolvable:$true] %s386
          %s388 = sshll.u32 %s384, 4
          %s389 = int_to_ptr.hbm [resolvable:$true] %s388
          %391 = dma.vmem_to_hbm [thread:$0]  %s387, 128, %s389, %s370
        $region40: #{tpu_custom_call.1} parent=35 // pred_fallthru
          _
        // Predicated region
        $region41: #{tpu_custom_call.1} parent=35 // pred_check
          %p392 = pneg %p153
        $region42: #{tpu_custom_call.1} parent=35 // pred_check_branch
          %394 = sbr.rel (%p392) target = $region44
        $region43: #{tpu_custom_call.1} parent=35 // pred_region
          _
        $region44: #{tpu_custom_call.1} parent=35 // pred_fallthru
          _
      $region36: #{tpu_custom_call.1} parent=5 // pred_fallthru
        _
      %p395 = scmp.le.s32.totalorder 2, %s15
      // Predicated region
      $region45: #{tpu_custom_call.1} parent=5 // pred_check
        %p396 = pneg %p395
      $region46: #{tpu_custom_call.1} parent=5 // pred_check_branch
        %398 = sbr.rel (%p396) target = $region48
      $region47: #{tpu_custom_call.1} parent=5 // pred_region
        %s399 = ssub.s32 %s15, 2
        // Predicated region
        $region49: #{tpu_custom_call.1} parent=47 // pred_check
          %p400 = pneg %p133
        $region50: #{tpu_custom_call.1} parent=47 // pred_check_branch
          %402 = sbr.rel (%p400) target = $region52
        $region51: #{tpu_custom_call.1} parent=47 // pred_region
          %s403 = sand.u32 %s118, 1
          %s404 = scalar_lea.sflag [#allocation3], %s403
          %s405 = sand.u32 %s118, 1
          %s406 = smul.addr %s405, 8
          %s407 = scalar_lea.vmem [#allocation2], %s406
          %409 = dma.done %s404, 128
        $region52: #{tpu_custom_call.1} parent=47 // pred_fallthru
          _
        // Predicated region
        $region53: #{tpu_custom_call.1} parent=47 // pred_check
          %p410 = pneg %p159
        $region54: #{tpu_custom_call.1} parent=47 // pred_check_branch
          %412 = sbr.rel (%p410) target = $region56
        $region55: #{tpu_custom_call.1} parent=47 // pred_region
          %p413 = scmp.lt.s32.totalorder %s21, 1
          %s414 = scalar_select %p413, %s21, 1
          %s415 = smul.addr %s414, 8
          %s416 = scalar_lea.vmem %s5, %s415
        $region56: #{tpu_custom_call.1} parent=47 // pred_fallthru
          _
      $region48: #{tpu_custom_call.1} parent=5 // pred_fallthru
        _
    $region6: #{tpu_custom_call.1} parent=1 // loop_footer
      %s19 = sadd.s32 1, %s15
    $region7: #{tpu_custom_call.1} parent=1 // loop_footer_branch
      %14 = sbr.rel target = $region3
    $region8: #{tpu_custom_call.1} parent=1 // loop_exit
      _
    %417 = vsyncpa [#allocation3], 1
    %s418 = scalar_lea.sflag [#allocation3], 1
    %419 = vsyncpa %s418, 1

</llo_original>
